<compile_context>
chip_gen: v7x
topology: tpu7x:2x2x1
jax: 0.10.0
libtpu: 0.0.40
codegen_flags: <defaults>
</compile_context>

<pallas_src>
import functools

import jax
import jax.numpy as jnp
from jax.experimental import pallas as pl
from jax.experimental.pallas import tpu as pltpu


# ----------------------------- sizing helpers ---------------------------------
def _round_up(x, m):
    return ((x + m - 1) // m) * m


def _vmem_budget():
    """(target block bytes, scoped VMEM limit) sized off physical VMEM.

    Roll / mask temporaries are ~10-17x the f32 block, so keep blocks around
    0.5-1 MiB (already ~85% of the achievable tile-size curve) and the scoped
    limit at half of physical VMEM (v7x: 64 MiB phys -> 32 MiB limit, ~0.5 MiB
    blocks; v5e/v6e: 128 MiB -> 64 MiB limit, ~1 MiB blocks).
    """
    phys = 64 * 1024 * 1024                      # conservative fallback (v7x)
    try:
        phys = int(getattr(pltpu.get_tpu_info(), "vmem_capacity_bytes", phys))
    except Exception:
        pass
    phys = min(max(phys, 64 * 1024 * 1024), 128 * 1024 * 1024)
    return max(512 * 1024, phys // 128), phys // 2


_TARGET_BLOCK_BYTES, _VMEM_LIMIT_BYTES = _vmem_budget()


def _choose_batch(nc, bytes_per_plane, target_bytes):
    """Planes per block (B) and zero-padded plane count (NCp).

    B is a multiple of 8 (sublane-aligned blocks, tile-rule-safe) sized near
    `target_bytes`, and NCp is padded so there are >= 2 grid blocks (both v7x
    TensorCores get work on the "parallel" axis).
    """
    bytes_per_plane = max(int(bytes_per_plane), 1)
    if nc < 8:
        return nc, nc                            # one tiny full-array block
    if 8 * bytes_per_plane > target_bytes:
        # Large planes: sub-8-plane blocks.  TODO(synk): row-tile with a halo.
        b = max(1, int(target_bytes) // bytes_per_plane)
        return b, _round_up(nc, b)
    n_blocks = max(2, _round_up(nc * bytes_per_plane, target_bytes) // target_bytes)
    b = min(_round_up(-(-nc // n_blocks), 8), _round_up(nc, 8))
    ncp = _round_up(nc, b)
    if ncp // b < 2:                             # force >= 2 grid blocks
        ncp = 2 * b
    return b, ncp


# ----------------------------- in-kernel math ----------------------------------
def _sobel_mag_flat(x, W, L):
    """Sobel edge magnitude on flattened planes.

    x: (B, Lp) float32; each row is one HxW plane, flattened row-major
    (W fastest) and lane-padded to Lp (multiple of 128).  Neighbour access is
    a lane roll; borders (== conv2d zero padding) are masked with f32 0/1
    masks built once at (1, Lp) and broadcast along sublanes.
    """
    B, Lp = x.shape
    shape = x.shape

    # Cheap (1, Lp) mask construction; broadcast (manual CSE) along sublanes.
    p = jax.lax.broadcasted_iota(jnp.int32, (1, Lp), 1)     # flattened position
    col = p % W                                             # tiny: only Lp lanes
    bcast = lambda c: jnp.broadcast_to(c.astype(jnp.float32), shape)
    up_m = bcast(p >= W)
    down_m = bcast(p < (L - W))
    left_m = bcast(col != 0)
    right_m = bcast(col != (W - 1))

    def shift(v, k):
        # value at flattened position (p - k); wrap positions are masked.
        return pltpu.roll(v, k % Lp, 1)

    up = shift(x, W) * up_m                                  # x[r-1, c]
    down = shift(x, -W) * down_m                             # x[r+1, c]

    # Separable Sobel: vertical pass ...
    s = up + 2.0 * x + down                                  # smoothing (gx path)
    d = down - up                                            # difference (gy path)

    # ... then horizontal pass.
    s_l = shift(s, 1) * left_m
    s_r = shift(s, -1) * right_m
    d_l = shift(d, 1) * left_m
    d_r = shift(d, -1) * right_m

    gx = s_r - s_l
    gy = d_l + 2.0 * d + d_r
    return jnp.sqrt(gx * gx + gy * gy)


def _sobel_mag_kernel(x_ref, mag_ref, *, W, L):
    x = x_ref[...].astype(jnp.float32)                       # cast in VMEM
    mag_ref[...] = _sobel_mag_flat(x, W, L)


def _sobel_hinge_kernel(denom_ref, x_ref, tgt_ref, psum_ref, *, W, L):
    x = x_ref[...].astype(jnp.float32)
    tgt = tgt_ref[...].astype(jnp.float32)                   # bf16 target -> f32
    # Scalar reciprocal + multiply instead of elementwise divide (<=1 ulp diff);
    # denom == 0 (constant target image) yields inf/nan, same as the reference.
    inv_denom = 1.0 / denom_ref[0, 0]
    inp = _sobel_mag_flat(x, W, L) * inv_denom
    diff = jnp.maximum(tgt - inp, 0.0)
    dd = diff * diff
    # Lane-dense partial: reduce planes (sublane axis), then fold the 128-lane
    # groups with cheap aligned slices; write one (1, 1, 128) slab per block.
    row = jnp.sum(dd, axis=0, keepdims=True)                 # (1, Lp)
    Lp = row.shape[1]
    acc = row[:, 0:128]
    for g in range(1, Lp // 128):
        acc = acc + row[:, g * 128:(g + 1) * 128]
    psum_ref[...] = acc[None]                                # (1, 1, 128)


# --------------------------------- wrappers ------------------------------------
@jax.jit
def sobel_magnitude(img):
    """Depthwise Sobel edge magnitude, NCHW -> NCHW (float32)."""
    N, C, H, W = img.shape
    NC, L = N * C, H * W
    Lp = _round_up(L, 128)                                   # lane-dense rolls
    x2d = img.reshape(NC, L)                                 # free reshape
    if Lp != L:
        x2d = jnp.pad(x2d, ((0, 0), (0, Lp - L)))
    B, NCp = _choose_batch(NC, Lp * (img.dtype.itemsize + 4), _TARGET_BLOCK_BYTES)
    if NCp != NC:
        x2d = jnp.pad(x2d, ((0, NCp - NC), (0, 0)))          # zero planes
    mag = pl.pallas_call(
        functools.partial(_sobel_mag_kernel, W=W, L=L),
        out_shape=jax.ShapeDtypeStruct((NCp, Lp), jnp.float32),
        grid=(NCp // B,),
        in_specs=[pl.BlockSpec((B, Lp), lambda i: (i, 0))],
        out_specs=pl.BlockSpec((B, Lp), lambda i: (i, 0)),
        compiler_params=pltpu.CompilerParams(
            dimension_semantics=("parallel",),
            vmem_limit_bytes=_VMEM_LIMIT_BYTES),
    )(x2d)
    if NCp != NC or Lp != L:
        mag = mag[:NC, :L]
    return mag.reshape(N, C, H, W)


@jax.jit
def sobel_edge_loss(img, target_edges, norm_denominator):
    """forward(): mean(relu(target - sobel_mag(img)/denom)^2)."""
    N, C, H, W = img.shape
    NC, L = N * C, H * W
    Lp = _round_up(L, 128)
    x2d = img.reshape(NC, L)                                 # native dtype
    t2d = target_edges.reshape(NC, L)                        # native (bf16) dtype
    if Lp != L:
        x2d = jnp.pad(x2d, ((0, 0), (0, Lp - L)))
        t2d = jnp.pad(t2d, ((0, 0), (0, Lp - L)))
    bpp = Lp * (img.dtype.itemsize + target_edges.dtype.itemsize + 4)
    B, NCp = _choose_batch(NC, bpp, _TARGET_BLOCK_BYTES)
    if NCp != NC:
        # Zero-padded planes contribute 0: target pad is 0 and magnitude >= 0.
        x2d = jnp.pad(x2d, ((0, NCp - NC), (0, 0)))
        t2d = jnp.pad(t2d, ((0, NCp - NC), (0, 0)))
    G = NCp // B
    denom = jnp.asarray(norm_denominator, jnp.float32).reshape(1, 1)

    psums = pl.pallas_call(
        functools.partial(_sobel_hinge_kernel, W=W, L=L),
        out_shape=jax.ShapeDtypeStruct((G, 1, 128), jnp.float32),
        grid=(G,),
        in_specs=[
            pl.BlockSpec(memory_space=pltpu.MemorySpace.SMEM),   # denom scalar
            pl.BlockSpec((B, Lp), lambda i: (i, 0)),             # image planes
            pl.BlockSpec((B, Lp), lambda i: (i, 0)),             # target planes
        ],
        out_specs=pl.BlockSpec((1, 1, 128), lambda i: (i, 0, 0)),  # lane partials
        compiler_params=pltpu.CompilerParams(
            dimension_semantics=("parallel",),                   # disjoint outputs
            vmem_limit_bytes=_VMEM_LIMIT_BYTES),
    )(denom, x2d, t2d)
    return jnp.sum(psums) / jnp.float32(NC * L)


class ThresholdedSobelEdgeLoss:
    """JAX/Pallas port of the PyTorch module (forward pass only)."""

    def __init__(self, target_img, normalize=True, threshold=0.0,
                 target_dtype=jnp.bfloat16):
        self.threshold = threshold
        tgt = sobel_magnitude(target_img)
        if normalize:
            self.norm_denominator = jnp.max(tgt)
            tgt = tgt / self.norm_denominator
        else:
            self.norm_denominator = jnp.float32(1.0)
        tgt = jnp.where(tgt < threshold, jnp.float32(0.0), tgt)
        # Normalized target lives in [0, 1]; storing it narrow halves the loss
        # kernel's target HBM reads (v5e is near HBM-bound).  bf16 rounding is
        # a deliberate tiny numeric change; use target_dtype=jnp.float32 for
        # exact parity with the PyTorch reference.
        self.target = tgt.astype(target_dtype)

    def __call__(self, img, features=None):
        return sobel_edge_loss(img, self.target, self.norm_denominator)


# ------------------------- pure-JAX reference -----------------------------------
def _reference_sobel_mag(x):
    kx = jnp.array([[-1, 0, 1], [-2, 0, 2], [-1, 0, 1]], jnp.float32)
    ky = kx.T
    N, C, H, W = x.shape
    xp = jnp.pad(x.astype(jnp.float32), ((0, 0), (0, 0), (1, 1), (1, 1)))
    gx = sum(kx[i, j] * xp[:, :, i:i + H, j:j + W]
             for i in range(3) for j in range(3))
    gy = sum(ky[i, j] * xp[:, :, i:i + H, j:j + W]
             for i in range(3) for j in range(3))
    return jnp.sqrt(gx * gx + gy * gy)


def _reference_loss(img, target_img, threshold=0.0):
    tgt = _reference_sobel_mag(target_img)
    denom = jnp.max(tgt)
    tgt = tgt / denom
    tgt = jnp.where(tgt < threshold, 0.0, tgt)
    inp = _reference_sobel_mag(img) / denom
    return jnp.mean(jnp.maximum(tgt - inp, 0.0) ** 2)


if __name__ == "__main__":
    key = jax.random.PRNGKey(0)
    k_tgt, k_img = jax.random.split(key)
    target_img = jax.random.uniform(k_tgt, (2, 4, 16, 16), dtype=jnp.float32)
    img = jax.random.uniform(k_img, (2, 4, 16, 16), dtype=jnp.float32)

    ref = jax.block_until_ready(_reference_loss(img, target_img, threshold=0.0))

    # Exact-dtype target: tight check against the pure-JAX reference.
    loss_f32 = jax.block_until_ready(
        ThresholdedSobelEdgeLoss(target_img, normalize=True, threshold=0.0,
                                 target_dtype=jnp.float32)(img))
    assert jnp.allclose(loss_f32, ref, rtol=1e-4, atol=1e-6), (loss_f32, ref)

    # Default (bf16-stored target): looser check (bf16 rounding of the target).
    loss_bf16 = jax.block_until_ready(
        ThresholdedSobelEdgeLoss(target_img, normalize=True, threshold=0.0)(img))
    assert jnp.allclose(loss_bf16, ref, rtol=2e-2, atol=1e-4), (loss_bf16, ref)

    print("KERNEL_OK")
</pallas_src>

<mosaic_0001>
module attributes {stable_mosaic.version = 11 : i64} {
  func.func @_sobel_mag_kernel(%arg0: i32, %arg1: memref<8x256xf32, #tpu.memory_space<vmem>>, %arg2: memref<8x256xf32, #tpu.memory_space<vmem>>) attributes {dimension_semantics = [#tpu.dimension_semantics<parallel>], iteration_bounds = array<i64: 2>, scalar_prefetch = 0 : i64, scratch_operands = 0 : i64, tpu.core_type = #tpu.core_type<tc>, window_params = [{transform_indices = @transform_0, window_bounds = array<i64: 8, 256>}, {transform_indices = @transform_1, window_bounds = array<i64: 8, 256>}]} {
    %c0 = arith.constant 0 : index
    %c0_0 = arith.constant 0 : index
    %0 = vector.load %arg1[%c0, %c0_0] : memref<8x256xf32, #tpu.memory_space<vmem>>, vector<8x256xf32>
    %1 = tpu.iota {dimensions = array<i32: 1>} : vector<1x256xi32>
    %c16_i32 = arith.constant 16 : i32
    %c0_i32 = arith.constant 0 : i32
    %2 = arith.cmpi eq, %c16_i32, %c0_i32 : i32
    %c1_i32 = arith.constant 1 : i32
    %3 = arith.select %2, %c1_i32, %c16_i32 : i32
    %4 = vector.broadcast %3 : i32 to vector<1x256xi32>
    %5 = arith.remsi %1, %4 : vector<1x256xi32>
    %c0_i32_1 = arith.constant 0 : i32
    %6 = vector.broadcast %c0_i32_1 : i32 to vector<1x256xi32>
    %7 = arith.cmpi ne, %5, %6 : vector<1x256xi32>
    %c0_i32_2 = arith.constant 0 : i32
    %8 = vector.broadcast %c0_i32_2 : i32 to vector<1x256xi32>
    %9 = arith.cmpi slt, %5, %8 : vector<1x256xi32>
    %c0_i32_3 = arith.constant 0 : i32
    %10 = arith.cmpi slt, %3, %c0_i32_3 : i32
    %11 = vector.broadcast %10 : i1 to vector<1x256xi1>
    %12 = vector.broadcast %11 : vector<1x256xi1> to vector<1x256xi1>
    %13 = arith.xori %9, %12 : vector<1x256xi1>
    %14 = arith.andi %13, %7 : vector<1x256xi1>
    %15 = vector.broadcast %3 : i32 to vector<1x256xi32>
    %16 = arith.addi %5, %15 : vector<1x256xi32>
    %17 = arith.select %14, %16, %5 : vector<1x256xi1>, vector<1x256xi32>
    %c16_i32_4 = arith.constant 16 : i32
    %18 = vector.broadcast %c16_i32_4 : i32 to vector<1x256xi32>
    %19 = arith.cmpi sge, %1, %18 : vector<1x256xi32>
    %20 = arith.extui %19 : vector<1x256xi1> to vector<1x256xi32>
    %21 = arith.sitofp %20 : vector<1x256xi32> to vector<1x256xf32>
    %22 = vector.shape_cast %21 : vector<1x256xf32> to vector<1x256xf32>
    %23 = vector.broadcast %22 : vector<1x256xf32> to vector<8x256xf32>
    %c240_i32 = arith.constant 240 : i32
    %24 = vector.broadcast %c240_i32 : i32 to vector<1x256xi32>
    %25 = arith.cmpi slt, %1, %24 : vector<1x256xi32>
    %26 = arith.extui %25 : vector<1x256xi1> to vector<1x256xi32>
    %27 = arith.sitofp %26 : vector<1x256xi32> to vector<1x256xf32>
    %28 = vector.shape_cast %27 : vector<1x256xf32> to vector<1x256xf32>
    %29 = vector.broadcast %28 : vector<1x256xf32> to vector<8x256xf32>
    %c0_i32_5 = arith.constant 0 : i32
    %30 = vector.broadcast %c0_i32_5 : i32 to vector<1x256xi32>
    %31 = arith.cmpi ne, %17, %30 : vector<1x256xi32>
    %32 = arith.extui %31 : vector<1x256xi1> to vector<1x256xi32>
    %33 = arith.sitofp %32 : vector<1x256xi32> to vector<1x256xf32>
    %34 = vector.shape_cast %33 : vector<1x256xf32> to vector<1x256xf32>
    %35 = vector.broadcast %34 : vector<1x256xf32> to vector<8x256xf32>
    %c15_i32 = arith.constant 15 : i32
    %36 = vector.broadcast %c15_i32 : i32 to vector<1x256xi32>
    %37 = arith.cmpi ne, %17, %36 : vector<1x256xi32>
    %38 = arith.extui %37 : vector<1x256xi1> to vector<1x256xi32>
    %39 = arith.sitofp %38 : vector<1x256xi32> to vector<1x256xf32>
    %40 = vector.shape_cast %39 : vector<1x256xf32> to vector<1x256xf32>
    %41 = vector.broadcast %40 : vector<1x256xf32> to vector<8x256xf32>
    %c16_i32_6 = arith.constant 16 : i32
    %42 = tpu.dynamic_rotate %0 by %c16_i32_6 dim 1 : vector<8x256xf32>, i32 -> vector<8x256xf32>
    %43 = arith.mulf %42, %23 : vector<8x256xf32>
    %c240_i32_7 = arith.constant 240 : i32
    %44 = tpu.dynamic_rotate %0 by %c240_i32_7 dim 1 : vector<8x256xf32>, i32 -> vector<8x256xf32>
    %45 = arith.mulf %44, %29 : vector<8x256xf32>
    %cst = arith.constant 2.000000e+00 : f32
    %46 = vector.broadcast %cst : f32 to vector<8x256xf32>
    %47 = arith.mulf %46, %0 : vector<8x256xf32>
    %48 = arith.addf %43, %47 : vector<8x256xf32>
    %49 = arith.addf %48, %45 : vector<8x256xf32>
    %50 = arith.subf %45, %43 : vector<8x256xf32>
    %c1_i32_8 = arith.constant 1 : i32
    %51 = tpu.dynamic_rotate %49 by %c1_i32_8 dim 1 : vector<8x256xf32>, i32 -> vector<8x256xf32>
    %52 = arith.mulf %51, %35 : vector<8x256xf32>
    %c255_i32 = arith.constant 255 : i32
    %53 = tpu.dynamic_rotate %49 by %c255_i32 dim 1 : vector<8x256xf32>, i32 -> vector<8x256xf32>
    %54 = arith.mulf %53, %41 : vector<8x256xf32>
    %c1_i32_9 = arith.constant 1 : i32
    %55 = tpu.dynamic_rotate %50 by %c1_i32_9 dim 1 : vector<8x256xf32>, i32 -> vector<8x256xf32>
    %56 = arith.mulf %55, %35 : vector<8x256xf32>
    %c255_i32_10 = arith.constant 255 : i32
    %57 = tpu.dynamic_rotate %50 by %c255_i32_10 dim 1 : vector<8x256xf32>, i32 -> vector<8x256xf32>
    %58 = arith.mulf %57, %41 : vector<8x256xf32>
    %59 = arith.subf %54, %52 : vector<8x256xf32>
    %cst_11 = arith.constant 2.000000e+00 : f32
    %60 = vector.broadcast %cst_11 : f32 to vector<8x256xf32>
    %61 = arith.mulf %60, %50 : vector<8x256xf32>
    %62 = arith.addf %56, %61 : vector<8x256xf32>
    %63 = arith.addf %62, %58 : vector<8x256xf32>
    %64 = arith.mulf %59, %59 : vector<8x256xf32>
    %65 = arith.mulf %63, %63 : vector<8x256xf32>
    %66 = arith.addf %64, %65 : vector<8x256xf32>
    %67 = math.sqrt %66 : vector<8x256xf32>
    %c0_12 = arith.constant 0 : index
    %c0_13 = arith.constant 0 : index
    %68 = vector.load %arg2[%c0_12, %c0_13] : memref<8x256xf32, #tpu.memory_space<vmem>>, vector<8x256xf32>
    tpu.vector_store %arg2[%c0_12, %c0_13], %67 {strides = array<i32>} : memref<8x256xf32, #tpu.memory_space<vmem>>, vector<8x256xf32>,
    return
  }
  func.func @transform_0(%arg0: i32) -> (i32, i32) {
    %c0_i32 = arith.constant 0 : i32
    %c0_i32_0 = arith.constant 0 : i32
    return %arg0, %c0_i32 : i32, i32
  }
  func.func @transform_1(%arg0: i32) -> (i32, i32) {
    %c0_i32 = arith.constant 0 : i32
    %c0_i32_0 = arith.constant 0 : i32
    return %arg0, %c0_i32 : i32, i32
  }
}

</mosaic_0001>

<llo_original>
// kernel: sobel_magnitude.1
$region0: #{sobel_magnitude.1}
  #allocation0 [shape = 'u32[]', space=smem, size = 0x4, offset = 0x4, fixed_abs, tag = 'smem constant byte address 0x4 - core index']
  #allocation1 [shape = 'u32[144,128]{1,0:T(1,128)}', space=vmem, size = 0x12000, scoped, tag = 'internal scratch']
  %s0 = inlined_call_operand.vmem [shape: f32[16,256], index: 0, kind: input, shape index: {}]
  %s1 = inlined_call_operand.vmem [shape: f32[16,256], index: 1, kind: output, shape index: {}]
  %s2 = sld [smem:[#allocation0]]
  $region37: #{sobel_magnitude.1} parent=0
    _
  %s4 = ssub.s32 1, %s2
  %s5 = scalar_select 0, %s4, %s2
  loop: start=0, step=1, limit=4
  $region2: #{sobel_magnitude.1} parent=0 // loop_pre_header
    _
  $region3: #{sobel_magnitude.1} parent=0 // loop_header
    %s7 = sphi 0, %s11
    %p8 = scmp.ge.s32.totalorder %s7, 4
    %s17 = sphi 0, %s19
    %s20 = sphi 0, %s17
    %s21 = sphi 0, %s20
    %s37 = sphi 0, %s21
    %s43 = sphi 0, %s45
    %s46 = sphi 0, %s43
    %s47 = sphi 0, %s46
    %s63 = sphi 0, %s47
  $region4: #{sobel_magnitude.1} parent=0 // loop_header_branch
    %10 = sbr.rel (%p8) target = $region8
  $region5: #{sobel_magnitude.1} parent=0 // loop_body
    %s12 = ssub.s32 %s7, 1
    %s13 = ssub.s32 %s7, 2
    %s14 = sadd.s32 %s7, 1
    %s15 = ssub.s32 %s7, %s14
    %p16 = scmp.eq.s32.totalorder %s15, 0
    %s18 = sadd.s32 %s17, 1
    %s19 = scalar_select %p16, %s17, %s18
    %p22 = pneg %p16
    %p23 = scmp.eq.s32.totalorder %s7, 1
    %p24 = por %p22, %p23
    %p25 = scmp.ne.s32.totalorder %s17, %s20
    %p26 = scmp.eq.s32.totalorder %s7, 0
    %p27 = por %p25, %p26
    %p28 = scmp.ne.s32.totalorder %s17, %s20
    %p29 = scmp.eq.s32.totalorder %s12, 1
    %p30 = por %p28, %p29
    %p31 = scmp.ne.s32.totalorder %s20, %s21
    %p32 = scmp.eq.s32.totalorder %s12, 0
    %p33 = por %p31, %p32
    %p34 = scmp.ne.s32.totalorder %s20, %s21
    %p35 = scmp.eq.s32.totalorder %s13, 1
    %p36 = por %p34, %p35
    %p38 = scmp.ne.s32.totalorder %s21, %s37
    %p39 = scmp.eq.s32.totalorder %s13, 0
    %p40 = por %p38, %p39
    %s41 = ssub.s32 %s7, %s14
    %p42 = scmp.eq.s32.totalorder %s41, 0
    %s44 = sadd.s32 %s43, 1
    %s45 = scalar_select %p42, %s43, %s44
    %p48 = pneg %p42
    %p49 = scmp.eq.s32.totalorder %s7, 1
    %p50 = por %p48, %p49
    %p51 = scmp.ne.s32.totalorder %s43, %s46
    %p52 = scmp.eq.s32.totalorder %s7, 0
    %p53 = por %p51, %p52
    %p54 = scmp.ne.s32.totalorder %s43, %s46
    %p55 = scmp.eq.s32.totalorder %s12, 1
    %p56 = por %p54, %p55
    %p57 = scmp.ne.s32.totalorder %s46, %s47
    %p58 = scmp.eq.s32.totalorder %s12, 0
    %p59 = por %p57, %p58
    %p60 = scmp.ne.s32.totalorder %s46, %s47
    %p61 = scmp.eq.s32.totalorder %s13, 1
    %p62 = por %p60, %p61
    %p64 = scmp.ne.s32.totalorder %s47, %s63
    %p65 = scmp.eq.s32.totalorder %s13, 0
    %p66 = por %p64, %p65
    %p67 = scmp.le.s32.totalorder 1, %s7
    %p68 = scmp.lt.s32.totalorder %s7, 3
    %p69 = pnand %p67, %p68
    %p70 = pneg %p69
    // Predicated region
    $region9: #{sobel_magnitude.1} parent=5 // pred_check
      _
    $region10: #{sobel_magnitude.1} parent=5 // pred_check_branch
      %72 = sbr.rel (%p69) target = $region12
    $region11: #{sobel_magnitude.1} parent=5 // pred_region
      %s73 = ssub.s32 %s7, 1
    $region12: #{sobel_magnitude.1} parent=5 // pred_fallthru
      _
    %p74 = scmp.lt.s32.totalorder %s7, 2
    // Predicated region
    $region13: #{sobel_magnitude.1} parent=5 // pred_check
      %p75 = pneg %p74
    $region14: #{sobel_magnitude.1} parent=5 // pred_check_branch
      %77 = sbr.rel (%p75) target = $region16
    $region15: #{sobel_magnitude.1} parent=5 // pred_region
      // Predicated region
      $region17: #{sobel_magnitude.1} parent=15 // pred_check
        %p78 = pneg %p27
      $region18: #{sobel_magnitude.1} parent=15 // pred_check_branch
        %80 = sbr.rel (%p78) target = $region20
      $region19: #{sobel_magnitude.1} parent=15 // pred_region
        %p81 = scmp.lt.s32.totalorder %s7, 1
        %s82 = scalar_select %p81, %s7, 1
        %s83 = smul.addr %s82, 2
        %s84 = smul.addr %s83, 8
        %s85 = scalar_lea.vmem %s0, %s84
      $region20: #{sobel_magnitude.1} parent=15 // pred_fallthru
        _
    $region16: #{sobel_magnitude.1} parent=5 // pred_fallthru
      _
    %p86 = scmp.le.s32.totalorder 1, %s7
    %p87 = scmp.lt.s32.totalorder %s7, 3
    %p88 = pnand %p86, %p87
    %p89 = pneg %p88
    // Predicated region
    $region21: #{sobel_magnitude.1} parent=5 // pred_check
      _
    $region22: #{sobel_magnitude.1} parent=5 // pred_check_branch
      %91 = sbr.rel (%p88) target = $region24
    $region23: #{sobel_magnitude.1} parent=5 // pred_region
      %s92 = ssub.s32 %s7, 1
      %p93 = scmp.lt.s32.totalorder %s12, 1
      %s94 = scalar_select %p93, %s12, 1
      %s95 = smul.addr %s94, 2
      %s96 = smul.addr %s95, 8
      %s97 = scalar_lea.vmem %s0, %s96
      %p98 = pneg %p33
      %p99 = pneg %p30
      %p100 = pneg %p59
      %p101 = pneg %p56
      %p102 = scmp.lt.s32.totalorder %s12, 1
      %s103 = scalar_select %p102, %s12, 1
      %s104 = smul.addr %s103, 2
      %s105 = smul.addr %s104, 8
      %s106 = scalar_lea.vmem %s1, %s105
      %p107 = scmp.lt.s32.totalorder %s12, 1
      %s108 = scalar_select %p107, %s12, 1
      %s109 = smul.addr %s108, 2
      %s110 = smul.addr %s109, 8
      %s111 = scalar_lea.vmem %s0, %s110
      %p112 = scmp.lt.s32.totalorder %s12, 1
      %s113 = scalar_select %p112, %s12, 1
      %s114 = smul.addr %s113, 2
      %s115 = smul.addr %s114, 8
      %s116 = scalar_lea.vmem %s1, %s115
      %v117 = vld [vmem:[%s111] sm:$0xff]
      %v118 = vld [vmem:[%s111 + $0x8] sm:$0xff]
      %v119 = vlaneseq
      %v120 = vand.u32 %v119, 127
      %v121 = vadd.s32 %v120, 128
      %vm122 = vcmp.lt.s32.totalorder %v120, 0
      %v123 = vsub.s32 0, %v120
      %v124 = vsel %vm122, %v123, %v120
      %v125 = vshrl.u32 %v124, 4
      %v126 = vand.u32 %v124, 15
      %v127 = vsub.s32 0, %v126
      %v128 = vsel %vm122, %v127, %v126
      %vm129 = vcmp.lt.s32.totalorder %v121, 0
      %v130 = vsub.s32 0, %v121
      %v131 = vsel %vm129, %v130, %v121
      %v132 = vshrl.u32 %v131, 4
      %v133 = vand.u32 %v131, 15
      %v134 = vsub.s32 0, %v133
      %v135 = vsel %vm129, %v134, %v133
      %vm136 = vcmp.ne.s32.totalorder %v128, 0
      %vm137 = vcmp.ne.s32.totalorder %v135, 0
      %vm138 = vcmp.lt.s32.totalorder %v128, 0
      %vm139 = vcmp.lt.s32.totalorder %v135, 0
      %vm140 = vmand %vm138, %vm136
      %vm141 = vmand %vm139, %vm137
      %v142 = vadd.s32 %v128, 16
      %v143 = vadd.s32 %v135, 16
      %v144 = vsel %vm140, %v142, %v128
      %v145 = vsel %vm141, %v143, %v135
      %vm146 = vcmp.ge.s32.totalorder %v120, 16
      %vm147 = vcmp.ge.s32.totalorder %v121, 16
      %v148 = vsel %vm146, 1, 0
      %v149 = vsel %vm147, 1, 0
      %v150 = vcvt.s32.f32 %v148
      %v151 = vcvt.s32.f32 %v149
      %vm152 = vcmp.lt.s32.totalorder %v120, 240
      %vm153 = vcmp.lt.s32.totalorder %v121, 240
      %v154 = vsel %vm152, 1, 0
      %v155 = vsel %vm153, 1, 0
      %v156 = vcvt.s32.f32 %v154
      %v157 = vcvt.s32.f32 %v155
      %vm158 = vcmp.ne.s32.totalorder %v144, 0
      %vm159 = vcmp.ne.s32.totalorder %v145, 0
      %v160 = vsel %vm158, 1, 0
      %v161 = vsel %vm159, 1, 0
      %v162 = vcvt.s32.f32 %v160
      %v163 = vcvt.s32.f32 %v161
      %vm164 = vcmp.ne.s32.totalorder %v144, 15
      %vm165 = vcmp.ne.s32.totalorder %v145, 15
      %v166 = vsel %vm164, 1, 0
      %v167 = vsel %vm165, 1, 0
      %v168 = vcvt.s32.f32 %v166
      %v169 = vcvt.s32.f32 %v167
      %170 = vrot.lane.b32.xlu0 %v117, 16
      %v171 = vpop.permute.xlu0 %170
      %172 = vrot.lane.b32.xlu0 %v118, 16
      %v173 = vpop.permute.xlu0 %172
      %vm174 = vcmp.lt.s32.totalorder %v120, 16
      %v175 = vsel %vm174, %v171, %v173
      %v176 = vsel %vm174, %v173, %v171
      %v177 = vmul.f32 %v176, %v150
      %v178 = vmul.f32 %v175, %v151
      %179 = vrot.lane.b32.xlu0 %v117, 112
      %v180 = vpop.permute.xlu0 %179
      %181 = vrot.lane.b32.xlu0 %v118, 112
      %v182 = vpop.permute.xlu0 %181
      %vm183 = vcmp.lt.s32.totalorder %v120, 112
      %v184 = vsel %vm183, %v180, %v182
      %v185 = vsel %vm183, %v182, %v180
      %v186 = vmul.f32 %v184, %v156
      %v187 = vmul.f32 %v185, %v157
      %v188 = vmul.f32 %v117, 2.0
      %v189 = vmul.f32 %v118, 2.0
      %v190 = vadd.f32 %v177, %v188
      %v191 = vadd.f32 %v178, %v189
      %v192 = vadd.f32 %v190, %v186
      %v193 = vadd.f32 %v191, %v187
      %v194 = vsub.f32 %v186, %v177
      %v195 = vsub.f32 %v187, %v178
      %196 = vrot.lane.b32.xlu0 %v192, 1
      %v197 = vpop.permute.xlu0 %196
      %198 = vrot.lane.b32.xlu0 %v193, 1
      %v199 = vpop.permute.xlu0 %198
      %vm200 = vcmp.lt.s32.totalorder %v120, 1
      %v201 = vsel %vm200, %v197, %v199
      %v202 = vsel %vm200, %v199, %v197
      %v203 = vmul.f32 %v202, %v162
      %v204 = vmul.f32 %v201, %v163
      %205 = vrot.lane.b32.xlu0 %v192, 127
      %v206 = vpop.permute.xlu0 %205
      %207 = vrot.lane.b32.xlu0 %v193, 127
      %v208 = vpop.permute.xlu0 %207
      %vm209 = vcmp.lt.s32.totalorder %v120, 127
      %v210 = vsel %vm209, %v206, %v208
      %v211 = vsel %vm209, %v208, %v206
      %v212 = vmul.f32 %v210, %v168
      %v213 = vmul.f32 %v211, %v169
      %214 = vrot.lane.b32.xlu0 %v194, 1
      %v215 = vpop.permute.xlu0 %214
      %216 = vrot.lane.b32.xlu0 %v195, 1
      %v217 = vpop.permute.xlu0 %216
      %v218 = vsel %vm200, %v215, %v217
      %v219 = vsel %vm200, %v217, %v215
      %v220 = vmul.f32 %v219, %v162
      %v221 = vmul.f32 %v218, %v163
      %222 = vrot.lane.b32.xlu0 %v194, 127
      %v223 = vpop.permute.xlu0 %222
      %224 = vrot.lane.b32.xlu0 %v195, 127
      %v225 = vpop.permute.xlu0 %224
      %v226 = vsel %vm209, %v223, %v225
      %v227 = vsel %vm209, %v225, %v223
      %v228 = vmul.f32 %v226, %v168
      %v229 = vmul.f32 %v227, %v169
      %v230 = vsub.f32 %v212, %v203
      %v231 = vsub.f32 %v213, %v204
      %v232 = vmul.f32 %v194, 2.0
      %v233 = vmul.f32 %v195, 2.0
      %v234 = vadd.f32 %v220, %v232
      %v235 = vadd.f32 %v221, %v233
      %v236 = vadd.f32 %v234, %v228
      %v237 = vadd.f32 %v235, %v229
      %v238 = vmul.f32 %v230, %v230
      %v239 = vmul.f32 %v231, %v231
      %v240 = vmul.f32 %v236, %v236
      %v241 = vmul.f32 %v237, %v237
      %v242 = vadd.f32 %v238, %v240
      %v243 = vadd.f32 %v239, %v241
      %v244 = vrsqrt.pop %v242
      %v245 = vmul.f32 %v242, %v244
      %vm246 = vcmp.eq.f32.partialorder %v242, inf
      %v247 = vsel %vm246, %v242, %v245
      %vm248 = vcmp.eq.f32.partialorder %v242, 0.0
      %v249 = vand.u32 %v242, 2147483648
      %v250 = vsel %vm248, %v249, %v247
      %v251 = vrsqrt.pop %v243
      %v252 = vmul.f32 %v243, %v251
      %vm253 = vcmp.eq.f32.partialorder %v243, inf
      %v254 = vsel %vm253, %v243, %v252
      %vm255 = vcmp.eq.f32.partialorder %v243, 0.0
      %v256 = vand.u32 %v243, 2147483648
      %v257 = vsel %vm255, %v256, %v254
      %258 = vst [vmem:[%s116] sm:$0xff] %v250
      %259 = vst [vmem:[%s116 + $0x8] sm:$0xff] %v257
      %p260 = scmp.lt.s32.totalorder %s12, 1
      %s261 = scalar_select %p260, %s12, 1
      %s262 = smul.addr %s261, 2
      %s263 = smul.addr %s262, 8
      %s264 = scalar_lea.vmem %s1, %s263
      // Predicated region
      $region25: #{sobel_magnitude.1} parent=23 // pred_check
        %p265 = pneg %p56
      $region26: #{sobel_magnitude.1} parent=23 // pred_check_branch
        %267 = sbr.rel (%p265) target = $region28
      $region27: #{sobel_magnitude.1} parent=23 // pred_region
        _
      $region28: #{sobel_magnitude.1} parent=23 // pred_fallthru
        _
    $region24: #{sobel_magnitude.1} parent=5 // pred_fallthru
      _
    %p268 = scmp.le.s32.totalorder 2, %s7
    // Predicated region
    $region29: #{sobel_magnitude.1} parent=5 // pred_check
      %p269 = pneg %p268
    $region30: #{sobel_magnitude.1} parent=5 // pred_check_branch
      %271 = sbr.rel (%p269) target = $region32
    $region31: #{sobel_magnitude.1} parent=5 // pred_region
      %s272 = ssub.s32 %s7, 2
      // Predicated region
      $region33: #{sobel_magnitude.1} parent=31 // pred_check
        %p273 = pneg %p62
      $region34: #{sobel_magnitude.1} parent=31 // pred_check_branch
        %275 = sbr.rel (%p273) target = $region36
      $region35: #{sobel_magnitude.1} parent=31 // pred_region
        %p276 = scmp.lt.s32.totalorder %s13, 1
        %s277 = scalar_select %p276, %s13, 1
        %s278 = smul.addr %s277, 2
        %s279 = smul.addr %s278, 8
        %s280 = scalar_lea.vmem %s1, %s279
      $region36: #{sobel_magnitude.1} parent=31 // pred_fallthru
        _
    $region32: #{sobel_magnitude.1} parent=5 // pred_fallthru
      _
  $region6: #{sobel_magnitude.1} parent=0 // loop_footer
    %s11 = sadd.s32 1, %s7
  $region7: #{sobel_magnitude.1} parent=0 // loop_footer_branch
    %6 = sbr.rel target = $region3
  $region8: #{sobel_magnitude.1} parent=0 // loop_exit
    _

</llo_original>
